<compile_context>
chip_gen: v7x
topology: tpu7x:2x2x1
jax: 0.10.0
libtpu: 0.0.40
codegen_flags: <defaults>
</compile_context>

<pallas_src>
import jax
import jax.numpy as jnp
from jax.experimental import pallas as pl
from jax.experimental.pallas import tpu as pltpu


def _linear_nobias_kernel(x_ref, w_ref, o_ref):
    """One output tile: o = x @ w (full K resident, f32 accumulation)."""
    o_ref[...] = jnp.dot(
        x_ref[...], w_ref[...], preferred_element_type=jnp.float32
    ).astype(o_ref.dtype)


def stgsn_dec_forward(dyn_emb, w_l, *, tm=1024):
    """Pallas implementation of STGSN_Dec.forward (x = self.l(dyn_emb)).

    dyn_emb: [N, K]  (K = 2 * emb_dim)
    w_l:     [M, K]  (nn.Linear weight layout, M = emb_dim2)
    returns: [N, M]
    """
    N, K = dyn_emb.shape
    M, K2 = w_l.shape
    assert K2 == K, (w_l.shape, dyn_emb.shape)

    tm = max(8, (tm // 8) * 8)  # keep row tiles (8,·)-aligned

    # Weight is tiny (M x K, both <= a few hundred); transposing it once per
    # call is negligible.  TODO(synk): hoist w_t / w_big out of the call if
    # this ever sits inside a training loop with a large weight.
    w_t = w_l.T  # [K, M]

    cost = pl.CostEstimate(
        flops=2 * N * M * K,
        transcendentals=0,
        bytes_accessed=dyn_emb.dtype.itemsize * (N * K + K * M + N * M),
    )

    # --- lane-dense grouping factor when the output feature dim is < 128 ---
    g = 1
    if M < 128:
        for cand in range(128 // M, 0, -1):
            if N % cand == 0:
                g = cand
                break

    if g > 1:
        # Grouped, lane-dense path: [N/g, g*K] @ [g*K, g*M] -> [N/g, g*M].
        rows_r = N // g
        x_r = dyn_emb.reshape(rows_r, g * K)                  # free reshape
        w_big = jnp.kron(jnp.eye(g, dtype=w_t.dtype), w_t)    # block-diagonal
        block_rows = max(8, ((tm // g) // 8) * 8)
        block_rows = min(rows_r, block_rows)
        grid = (pl.cdiv(rows_r, block_rows),)

        out_r = pl.pallas_call(
            _linear_nobias_kernel,
            out_shape=jax.ShapeDtypeStruct((rows_r, g * M), dyn_emb.dtype),
            grid_spec=pltpu.PrefetchScalarGridSpec(
                num_scalar_prefetch=0,
                grid=grid,
                in_specs=[
                    pl.BlockSpec((block_rows, g * K), lambda i: (i, 0)),
                    pl.BlockSpec((g * K, g * M), lambda i: (0, 0)),
                ],
                out_specs=pl.BlockSpec((block_rows, g * M), lambda i: (i, 0)),
            ),
            compiler_params=pltpu.CompilerParams(
                dimension_semantics=("parallel",)
            ),
            cost_estimate=cost,
        )(x_r, w_big)
        return out_r.reshape(N, M)                            # free reshape

    # --- general path (M >= 128 or no valid grouping): 2-D parallel grid ---
    block_rows = min(N, tm)
    tn = min(M, 128)
    grid = (pl.cdiv(N, block_rows), pl.cdiv(M, tn))

    return pl.pallas_call(
        _linear_nobias_kernel,
        out_shape=jax.ShapeDtypeStruct((N, M), dyn_emb.dtype),
        grid_spec=pltpu.PrefetchScalarGridSpec(
            num_scalar_prefetch=0,
            grid=grid,
            in_specs=[
                pl.BlockSpec((block_rows, K), lambda i, j: (i, 0)),
                pl.BlockSpec((K, tn), lambda i, j: (0, j)),
            ],
            out_specs=pl.BlockSpec((block_rows, tn), lambda i, j: (i, j)),
        ),
        compiler_params=pltpu.CompilerParams(
            dimension_semantics=("parallel", "parallel")
        ),
        cost_estimate=cost,
    )(dyn_emb, w_t)


def init_stgsn_dec_params(key, emb_dim, emb_dim2):
    """Deterministic synthetic parameters matching the module's shapes."""
    k_dec_w, k_dec_b, k_l = jax.random.split(key, 3)
    return {
        # self.dec = nn.Linear(4 * emb_dim, 1)  -- unused in forward.
        "dec_w": jax.random.normal(k_dec_w, (1, 4 * emb_dim), jnp.float32) * 0.05,
        "dec_b": jax.random.normal(k_dec_b, (1,), jnp.float32) * 0.05,
        # self.l = nn.Linear(2 * emb_dim, emb_dim2, bias=False)
        "l_w": jax.random.normal(k_l, (emb_dim2, 2 * emb_dim), jnp.float32) * 0.05,
    }


if __name__ == "__main__":
    key = jax.random.PRNGKey(0)
    k_params, k_x, k_params2 = jax.random.split(key, 3)

    # --- primary demo: emb_dim2 < 128 exercises the lane-dense grouped path ---
    emb_dim, emb_dim2, num_nodes = 16, 32, 64
    params = init_stgsn_dec_params(k_params, emb_dim, emb_dim2)
    dyn_emb = jax.random.normal(k_x, (num_nodes, 2 * emb_dim), jnp.float32)

    out = jax.block_until_ready(stgsn_dec_forward(dyn_emb, params["l_w"]))
    ref = dyn_emb @ params["l_w"].T
    assert out.shape == (num_nodes, emb_dim2), out.shape
    assert jnp.allclose(out, ref, atol=1e-4, rtol=1e-4), "grouped path mismatch"

    # --- secondary check: emb_dim2 = 128 exercises the general path ---
    params2 = init_stgsn_dec_params(k_params2, emb_dim, 128)
    out2 = jax.block_until_ready(stgsn_dec_forward(dyn_emb, params2["l_w"]))
    ref2 = dyn_emb @ params2["l_w"].T
    assert out2.shape == (num_nodes, 128), out2.shape
    assert jnp.allclose(out2, ref2, atol=1e-4, rtol=1e-4), "general path mismatch"

    print("KERNEL_OK")
</pallas_src>

<mosaic_0001>
module attributes {stable_mosaic.version = 11 : i64} {
  func.func @_linear_nobias_kernel(%arg0: i32, %arg1: memref<16x128xf32, #tpu.memory_space<vmem>>, %arg2: memref<128x128xf32, #tpu.memory_space<vmem>>, %arg3: memref<16x128xf32, #tpu.memory_space<vmem>>) attributes {dimension_semantics = [#tpu.dimension_semantics<parallel>], iteration_bounds = array<i64: 1>, scalar_prefetch = 0 : i64, scratch_operands = 0 : i64, tpu.core_type = #tpu.core_type<tc>, window_params = [{transform_indices = @transform_0, window_bounds = array<i64: 16, 128>}, {pipeline_mode = #tpu.pipeline_mode<synchronous>, transform_indices = @transform_1, window_bounds = array<i64: 128, 128>}, {transform_indices = @transform_2, window_bounds = array<i64: 16, 128>}]} {
    %c0 = arith.constant 0 : index
    %c0_0 = arith.constant 0 : index
    %0 = vector.load %arg1[%c0, %c0_0] : memref<16x128xf32, #tpu.memory_space<vmem>>, vector<16x128xf32>
    %c0_1 = arith.constant 0 : index
    %c0_2 = arith.constant 0 : index
    %1 = vector.load %arg2[%c0_1, %c0_2] : memref<128x128xf32, #tpu.memory_space<vmem>>, vector<128x128xf32>
    %cst = arith.constant dense<0.000000e+00> : vector<16x128xf32>
    %2 = tpu.matmul %0, %1, %cst {dimension_numbers = #tpu.dot_dimension_numbers<[1], [0], [0], [1], [0, 0, 1, 1], [], []>} : vector<16x128xf32>, vector<128x128xf32>, vector<16x128xf32> -> vector<16x128xf32>
    %c0_3 = arith.constant 0 : index
    %c0_4 = arith.constant 0 : index
    %3 = vector.load %arg3[%c0_3, %c0_4] : memref<16x128xf32, #tpu.memory_space<vmem>>, vector<16x128xf32>
    tpu.vector_store %arg3[%c0_3, %c0_4], %2 {strides = array<i32>} : memref<16x128xf32, #tpu.memory_space<vmem>>, vector<16x128xf32>,
    return
  }
  func.func @transform_0(%arg0: i32) -> (i32, i32) {
    %c0_i32 = arith.constant 0 : i32
    %c0_i32_0 = arith.constant 0 : i32
    return %arg0, %c0_i32 : i32, i32
  }
  func.func @transform_1(%arg0: i32) -> (i32, i32) {
    %c0_i32 = arith.constant 0 : i32
    %c0_i32_0 = arith.constant 0 : i32
    %c0_i32_1 = arith.constant 0 : i32
    return %c0_i32, %c0_i32_0 : i32, i32
  }
  func.func @transform_2(%arg0: i32) -> (i32, i32) {
    %c0_i32 = arith.constant 0 : i32
    %c0_i32_0 = arith.constant 0 : i32
    return %arg0, %c0_i32 : i32, i32
  }
}

</mosaic_0001>

<llo_original>
// kernel: tpu_custom_call.1
$region0: #{tpu_custom_call.1}
  #allocation0 [shape = 'u32[]', space=smem, size = 0x4, offset = 0x4, fixed_abs, tag = 'smem constant byte address 0x4 - core index']
  #allocation1 [shape = 'u32[144,128]{1,0:T(1,128)}', space=vmem, size = 0x12000, scoped, tag = 'internal scratch']
  %s0 = inlined_call_operand.hbm [shape: f32[16,128], index: 0, kind: input, shape index: {}]
  %s1 = inlined_call_operand.hbm [shape: f32[128,128], index: 1, kind: input, shape index: {}]
  %s2 = inlined_call_operand.hbm [shape: f32[16,128], index: 2, kind: output, shape index: {}]
  %s3 = sld [smem:[#allocation0]]
  $region26: #{tpu_custom_call.1} parent=0
    _
  %s5 = ssub.s32 1, %s3
  %s6 = scalar_select 0, %s5, %s3
  $region1: #{tpu_custom_call.1} parent=0
    #allocation2 [shape = 'u8[8192]{0}', space=vmem, size = 0x2000, scoped, tag = 'input window, operand 0, single buffered']
    #allocation3 [shape = 's32[1]{0}', space=sflag, size = 0x4, scoped, tag = 'scoped memory for tpu_custom_call.1']
    #allocation4 [shape = 's32[1]{0}', space=sflag, size = 0x4, scoped, tag = 'scoped memory for tpu_custom_call.1']
    #allocation5 [shape = 'u8[65536]{0}', space=vmem, size = 0x10000, scoped, tag = 'input window, operand 1, single buffered']
    #allocation6 [shape = 's32[1]{0}', space=sflag, size = 0x4, scoped, tag = 'scoped memory for tpu_custom_call.1']
    #allocation7 [shape = 'u8[8192]{0}', space=vmem, size = 0x2000, scoped, tag = 'output window, operand 0, single buffered']
    %7 = vsyncpa [#allocation3], 0
    %8 = vsyncpa [#allocation6], 0
    %9 = vsyncpa [#allocation4], 0
    // Predicated region
    $region2: #{tpu_custom_call.1} parent=1 // pred_check
      _
    $region3: #{tpu_custom_call.1} parent=1 // pred_check_branch
      %11 = sbr.rel (0) target = $region5
    $region4: #{tpu_custom_call.1} parent=1 // pred_region
      %s13 = ssub.s32 256, 256
      %14 = vsyncadd [#allocation3], %s13
      %s15 = sshll.u32 [#allocation2], 4
      %s16 = int_to_ptr.vmem [resolvable:$true] %s15
      %21 = dma.hbm_to_vmem [thread:$0]  %s0, 256, %s16, [#allocation3], 128, 128, 8
    $region5: #{tpu_custom_call.1} parent=1 // pred_fallthru
      _
    // Predicated region
    $region6: #{tpu_custom_call.1} parent=1 // pred_check
      _
    $region7: #{tpu_custom_call.1} parent=1 // pred_check_branch
      %23 = sbr.rel (0) target = $region9
    $region8: #{tpu_custom_call.1} parent=1 // pred_region
      %s25 = ssub.s32 2048, 2048
      %26 = vsyncadd [#allocation6], %s25
      %s27 = sshll.u32 [#allocation5], 4
      %s28 = int_to_ptr.vmem [resolvable:$true] %s27
      %33 = dma.hbm_to_vmem [thread:$0]  %s1, 2048, %s28, [#allocation6], 128, 128, 8
    $region9: #{tpu_custom_call.1} parent=1 // pred_fallthru
      _
    // Predicated region
    $region10: #{tpu_custom_call.1} parent=1 // pred_check
      _
    $region11: #{tpu_custom_call.1} parent=1 // pred_check_branch
      %35 = sbr.rel (0) target = $region13
    $region12: #{tpu_custom_call.1} parent=1 // pred_region
      %36 = dma.done [#allocation3], 256
    $region13: #{tpu_custom_call.1} parent=1 // pred_fallthru
      _
    // Predicated region
    $region14: #{tpu_custom_call.1} parent=1 // pred_check
      _
    $region15: #{tpu_custom_call.1} parent=1 // pred_check_branch
      %38 = sbr.rel (0) target = $region17
    $region16: #{tpu_custom_call.1} parent=1 // pred_region
      %39 = dma.done [#allocation6], 2048
    $region17: #{tpu_custom_call.1} parent=1 // pred_fallthru
      _
    %v40 = vld [vmem:[#allocation2] sm:$0xff]
    %v41 = vld [vmem:[#allocation2 + $0x8] sm:$0xff]
    %v42 = vld [vmem:[#allocation5] sm:$0xff]
    %v43 = vld [vmem:[#allocation5 + $0x8] sm:$0xff]
    %v44 = vld [vmem:[#allocation5 + $0x10] sm:$0xff]
    %v45 = vld [vmem:[#allocation5 + $0x18] sm:$0xff]
    %v46 = vld [vmem:[#allocation5 + $0x20] sm:$0xff]
    %v47 = vld [vmem:[#allocation5 + $0x28] sm:$0xff]
    %v48 = vld [vmem:[#allocation5 + $0x30] sm:$0xff]
    %v49 = vld [vmem:[#allocation5 + $0x38] sm:$0xff]
    %v50 = vld [vmem:[#allocation5 + $0x40] sm:$0xff]
    %v51 = vld [vmem:[#allocation5 + $0x48] sm:$0xff]
    %v52 = vld [vmem:[#allocation5 + $0x50] sm:$0xff]
    %v53 = vld [vmem:[#allocation5 + $0x58] sm:$0xff]
    %v54 = vld [vmem:[#allocation5 + $0x60] sm:$0xff]
    %v55 = vld [vmem:[#allocation5 + $0x68] sm:$0xff]
    %v56 = vld [vmem:[#allocation5 + $0x70] sm:$0xff]
    %v57 = vld [vmem:[#allocation5 + $0x78] sm:$0xff]
    %58 = vmatprep.subr.mxu0 0.0
    %59 = vmatpush1.msra.mxu0 %v42
    %60 = vmatprep.subr.mxu0 0.0
    %61 = vmatpush1.msra.mxu0 %v43
    %62 = vmatprep.subr.mxu0 0.0
    %63 = vmatpush1.msra.mxu0 %v44
    %64 = vmatprep.subr.mxu0 0.0
    %65 = vmatpush1.msra.mxu0 %v45
    %66 = vmatprep.subr.mxu0 0.0
    %67 = vmatpush1.msra.mxu0 %v46
    %68 = vmatprep.subr.mxu0 0.0
    %69 = vmatpush1.msra.mxu0 %v47
    %70 = vmatprep.subr.mxu0 0.0
    %71 = vmatpush1.msra.mxu0 %v48
    %72 = vmatprep.subr.mxu0 0.0
    %73 = vmatpush1.msra.mxu0 %v49
    %74 = vmatprep.subr.mxu0 0.0
    %75 = vmatpush1.msra.mxu0 %v50
    %76 = vmatprep.subr.mxu0 0.0
    %77 = vmatpush1.msra.mxu0 %v51
    %78 = vmatprep.subr.mxu0 0.0
    %79 = vmatpush1.msra.mxu0 %v52
    %80 = vmatprep.subr.mxu0 0.0
    %81 = vmatpush1.msra.mxu0 %v53
    %82 = vmatprep.subr.mxu0 0.0
    %83 = vmatpush1.msra.mxu0 %v54
    %84 = vmatprep.subr.mxu0 0.0
    %85 = vmatpush1.msra.mxu0 %v55
    %86 = vmatprep.subr.mxu0 0.0
    %87 = vmatpush1.msra.mxu0 %v56
    %88 = vmatprep.subr.mxu0 0.0
    %89 = vmatpush1.msra.mxu0 %v57
    %90 = vmatprep.subr.mxu0 0.0
    %91 = vmatpush1.msra.mxu0 0.0
    %92 = vmatprep.subr.mxu0 0.0
    %93 = vmatpush1.msra.mxu0 0.0
    %94 = vmatprep.subr.mxu0 0.0
    %95 = vmatpush1.msra.mxu0 0.0
    %96 = vmatprep.subr.mxu0 0.0
    %97 = vmatpush1.msra.mxu0 0.0
    %98 = vmatprep.subr.mxu0 0.0
    %99 = vmatpush1.msra.mxu0 0.0
    %100 = vmatprep.subr.mxu0 0.0
    %101 = vmatpush1.msra.mxu0 0.0
    %102 = vmatprep.subr.mxu0 0.0
    %103 = vmatpush1.msra.mxu0 0.0
    %104 = vmatprep.subr.mxu0 0.0
    %105 = vmatpush1.msra.mxu0 0.0
    %106 = vmatprep.subr.mxu0 0.0
    %107 = vmatpush1.msra.mxu0 0.0
    %108 = vmatprep.subr.mxu0 0.0
    %109 = vmatpush1.msra.mxu0 0.0
    %110 = vmatprep.subr.mxu0 0.0
    %111 = vmatpush1.msra.mxu0 0.0
    %112 = vmatprep.subr.mxu0 0.0
    %113 = vmatpush1.msra.mxu0 0.0
    %114 = vmatprep.subr.mxu0 0.0
    %115 = vmatpush1.msra.mxu0 0.0
    %116 = vmatprep.subr.mxu0 0.0
    %117 = vmatpush1.msra.mxu0 0.0
    %118 = vmatprep.subr.mxu0 0.0
    %119 = vmatpush1.msra.mxu0 0.0
    %120 = vmatprep.subr.mxu0 0.0
    %121 = vmatpush1.msra.mxu0 0.0
    %122 = vmatprep.mubr.f32.mxu0 0.0
    %123 = vmatmul.mubr.f32.gmra.mrb[0].mxu0 %v40
    %v124 = vpop.f32.mrb[0].mxu0
    %v125 = vadd.f32 0.0, %v124
    %v126 = vpop.f32.mrb[0].mxu0
    %127 = vmatprep.mubr.f32.mxu0 0.0
    %128 = vmatmul.mubr.f32.gmra.mrb[0].mxu0 %v41
    %v129 = vpop.f32.mrb[0].mxu0
    %v130 = vadd.f32 0.0, %v129
    %v131 = vpop.f32.mrb[0].mxu0
    %132 = vdwg.mxu0
    %133 = vst [vmem:[#allocation7] sm:$0xff] %v125
    %134 = vst [vmem:[#allocation7 + $0x8] sm:$0xff] %v130
    // Predicated region
    $region18: #{tpu_custom_call.1} parent=1 // pred_check
      _
    $region19: #{tpu_custom_call.1} parent=1 // pred_check_branch
      %136 = sbr.rel (0) target = $region21
    $region20: #{tpu_custom_call.1} parent=1 // pred_region
      %s138 = ssub.s32 256, 256
      %139 = vsyncadd [#allocation4], %s138
      %s140 = sshll.u32 [#allocation7], 4
      %s141 = int_to_ptr.vmem [resolvable:$true] %s140
      %146 = dma.vmem_to_hbm [thread:$0]  %s141, 256, %s2, [#allocation4], 128, 128, 8
    $region21: #{tpu_custom_call.1} parent=1 // pred_fallthru
      _
    // Predicated region
    $region22: #{tpu_custom_call.1} parent=1 // pred_check
      _
    $region23: #{tpu_custom_call.1} parent=1 // pred_check_branch
      %148 = sbr.rel (0) target = $region25
    $region24: #{tpu_custom_call.1} parent=1 // pred_region
      %149 = dma.done [#allocation4], 256
    $region25: #{tpu_custom_call.1} parent=1 // pred_fallthru
      _
    %150 = vsyncpa [#allocation3], 1
    %151 = vsyncpa [#allocation6], 1
    %152 = vsyncpa [#allocation4], 1

</llo_original>
